<compile_context>
chip_gen: v7x
topology: tpu7x:2x2x1
jax: 0.10.0
libtpu: 0.0.40
codegen_flags: <defaults>
</compile_context>

<pallas_src>
import functools

import jax
import jax.numpy as jnp
from jax import lax
from jax.experimental import pallas as pl
from jax.experimental.pallas import tpu as pltpu


# ----------------------------- Pallas kernel ------------------------------ #
def _fused_conv_relu_kernel(x_ref, w_ref, b_ref, o_ref, *, KH, W, HW):
    """Fused 3x3 conv (stride=1, pad=1) + bias + ReLU for one batch element.

    x_ref : [KW*C_in_pad, (H+2)*W] bf16  column-shifted, row-flattened input
    w_ref : [KH, C_out, KW*C_in_pad] bf16
    b_ref : [C_out, 1] f32
    o_ref : [C_out, H*W] f32             lane-dense output (H*W multiple of 128)
    """
    acc = jnp.zeros(o_ref.shape, dtype=jnp.float32)
    # KH accumulating MXU matmuls (KW folded into the contraction dim);
    # static (unrolled) loop, trip count is tiny.
    for kh in range(KH):
        lhs = w_ref[kh]                         # [C_out, KW*C_in_pad]   bf16
        rhs = x_ref[:, pl.ds(kh * W, HW)]       # [KW*C_in_pad, H*W]     bf16
        acc = acc + jnp.dot(lhs, rhs, preferred_element_type=jnp.float32)
    acc = acc + b_ref[...]                      # bias broadcast over lanes, once
    o_ref[...] = jnp.maximum(acc, 0.0).astype(o_ref.dtype)   # fused ReLU epilogue


@jax.jit
def conv2d_relu_pallas(x_nchw, weight, bias):
    """Conv2d(3x3, stride=1, padding=1) + ReLU. NCHW in / NCHW out."""
    N, C_in, H, W = x_nchw.shape
    C_out, _, KH, KW = weight.shape
    pad = 1
    HW = H * W                       # 256: lane-dense output width
    HPW = (H + 2 * pad) * W          # flattened length of each shifted view

    # Pad channels up to a sublane multiple so MXU operands are aligned.
    cin_p = max(8, ((C_in + 7) // 8) * 8)
    K = KW * cin_p                   # MXU contraction dim (24)

    # ---- layout plumbing (tiny, fused by XLA under jit; no layout transposes) ----
    x_pad = jnp.pad(
        x_nchw.astype(jnp.float32),
        ((0, 0), (0, cin_p - C_in), (pad, pad), (pad, pad)),
    )                                                     # [N, cin_p, H+2, W+2]
    # KW column-shifted views with rows flattened so the big spatial dim lands on
    # lanes and kw stacks along the contraction axis:
    #   x_shift[n, kw*cin_p + c, r*W + w] == x_pad[n, c, r, w + kw]
    x_shift = jnp.stack([x_pad[:, :, :, kw:kw + W] for kw in range(KW)], axis=1)
    x_shift = x_shift.reshape(N, K, HPW).astype(jnp.bfloat16)

    # Weights -> [KH, C_out, KW*cin_p] bf16 (transposed-GEMM orientation); bias f32.
    w_pad = jnp.pad(weight, ((0, 0), (0, cin_p - C_in), (0, 0), (0, 0)))
    w_prep = jnp.transpose(w_pad, (2, 0, 3, 1)).reshape(KH, C_out, K)
    w_prep = w_prep.astype(jnp.bfloat16)
    b_prep = bias.reshape(C_out, 1).astype(jnp.float32)

    kernel = functools.partial(_fused_conv_relu_kernel, KH=KH, W=W, HW=HW)

    flops = 2 * N * HW * KH * K * C_out
    bytes_accessed = (x_shift.size * 2 + w_prep.size * 2
                      + b_prep.size * 4 + N * C_out * HW * 4)

    out_flat = pl.pallas_call(
        kernel,
        out_shape=jax.ShapeDtypeStruct((N, C_out, HW), jnp.float32),
        grid_spec=pltpu.PrefetchScalarGridSpec(
            num_scalar_prefetch=0,
            grid=(N,),                                    # batch -> TensorCores
            in_specs=[
                pl.BlockSpec((None, K, HPW), lambda n: (n, 0, 0)),
                pl.BlockSpec((KH, C_out, K), lambda n: (0, 0, 0)),
                pl.BlockSpec((C_out, 1), lambda n: (0, 0)),
            ],
            out_specs=pl.BlockSpec((None, C_out, HW), lambda n: (n, 0, 0)),
        ),
        compiler_params=pltpu.CompilerParams(
            dimension_semantics=("parallel",)),
        cost_estimate=pl.CostEstimate(
            flops=flops, transcendentals=0, bytes_accessed=bytes_accessed),
    )(x_shift, w_prep, b_prep)

    # [N, C_out, H*W] -> [N, C_out, H, W]: contiguous reshape, already NCHW.
    return out_flat.reshape(N, C_out, H, W)


# -------------------------- wrapper (the module) --------------------------- #
class CustomDataParallelPallas:
    """Mirror of _CustomDataParallel: forward(*input) delegates to the wrapped
    model. DataParallel's batch scatter/gather is a semantic no-op on a single
    TensorCore chip, so forward() just runs the full batch through the fused
    Pallas model (the batch grid axis is marked "parallel" for multi-TC chips).
    """

    def __init__(self, weight, bias):
        # TODO(synk): the wrapped `model` is arbitrary in the PyTorch module; a
        # representative Conv2d(3x3, pad=1)+ReLU inner model is implemented here.
        self._params = {"weight": weight, "bias": bias}

    def forward(self, *inputs):
        (x,) = inputs
        return conv2d_relu_pallas(x, self._params["weight"], self._params["bias"])

    def __call__(self, *inputs):
        return self.forward(*inputs)

    def __getattr__(self, name):
        # Attribute passthrough to the wrapped "module", as in the PyTorch class.
        params = self.__dict__.get("_params", {})
        if name in params:
            return params[name]
        raise AttributeError(name)


# --------------------------------- main ------------------------------------ #
if __name__ == "__main__":
    key = jax.random.PRNGKey(0)
    k_x, k_w, k_b = jax.random.split(key, 3)

    N, C_in, H, W = 2, 4, 16, 16
    C_out, KH, KW = 8, 3, 3

    x = jax.random.normal(k_x, (N, C_in, H, W), dtype=jnp.float32)
    weight = jax.random.normal(k_w, (C_out, C_in, KH, KW), dtype=jnp.float32) * 0.1
    bias = jax.random.normal(k_b, (C_out,), dtype=jnp.float32) * 0.1

    model = CustomDataParallelPallas(weight, bias)
    out = jax.block_until_ready(model(x))

    # Reference check (plain JAX f32 conv) to validate kernel semantics.
    ref = lax.conv_general_dilated(
        x, weight, window_strides=(1, 1), padding=((1, 1), (1, 1)),
        dimension_numbers=("NCHW", "OIHW", "NCHW"))
    ref = jnp.maximum(ref + bias.reshape(1, C_out, 1, 1), 0.0)

    assert out.shape == (N, C_out, H, W)
    max_err = float(jnp.max(jnp.abs(out - ref)))
    assert jnp.allclose(out, ref, atol=5e-2, rtol=5e-2), max_err

    print("KERNEL_OK")
</pallas_src>

<mosaic_0001>
module attributes {stable_mosaic.version = 11 : i64} {
  func.func @_fused_conv_relu_kernel(%arg0: i32, %arg1: memref<1x24x288xbf16, #tpu.memory_space<vmem>>, %arg2: memref<3x8x24xbf16, #tpu.memory_space<vmem>>, %arg3: memref<8x1xf32, #tpu.memory_space<vmem>>, %arg4: memref<1x8x256xf32, #tpu.memory_space<vmem>>) attributes {dimension_semantics = [#tpu.dimension_semantics<parallel>], iteration_bounds = array<i64: 2>, scalar_prefetch = 0 : i64, scratch_operands = 0 : i64, tpu.core_type = #tpu.core_type<tc>, window_params = [{transform_indices = @transform_0, window_bounds = array<i64: 1, 24, 288>}, {pipeline_mode = #tpu.pipeline_mode<synchronous>, transform_indices = @transform_1, window_bounds = array<i64: 3, 8, 24>}, {pipeline_mode = #tpu.pipeline_mode<synchronous>, transform_indices = @transform_2, window_bounds = array<i64: 8, 1>}, {transform_indices = @transform_3, window_bounds = array<i64: 1, 8, 256>}]} {
    %cst = arith.constant 0.000000e+00 : f32
    %0 = vector.broadcast %cst : f32 to vector<8x256xf32>
    %c0 = arith.constant 0 : index
    %c0_0 = arith.constant 0 : index
    %c0_1 = arith.constant 0 : index
    %1 = vector.load %arg2[%c0, %c0_0, %c0_1] : memref<3x8x24xbf16, #tpu.memory_space<vmem>>, vector<1x8x24xbf16>
    %2 = vector.shape_cast %1 : vector<1x8x24xbf16> to vector<8x24xbf16>
    %c0_2 = arith.constant 0 : index
    %c0_3 = arith.constant 0 : index
    %c0_4 = arith.constant 0 : index
    %3 = vector.load %arg1[%c0_2, %c0_3, %c0_4] : memref<1x24x288xbf16, #tpu.memory_space<vmem>>, vector<1x24x256xbf16>
    %4 = vector.shape_cast %3 : vector<1x24x256xbf16> to vector<24x256xbf16>
    %cst_5 = arith.constant dense<0.000000e+00> : vector<8x256xf32>
    %5 = tpu.matmul %2, %4, %cst_5 {dimension_numbers = #tpu.dot_dimension_numbers<[1], [0], [0], [1], [0, 0, 1, 1], [], []>} : vector<8x24xbf16>, vector<24x256xbf16>, vector<8x256xf32> -> vector<8x256xf32>
    %6 = arith.addf %0, %5 : vector<8x256xf32>
    %c1 = arith.constant 1 : index
    %c0_6 = arith.constant 0 : index
    %c0_7 = arith.constant 0 : index
    %7 = vector.load %arg2[%c1, %c0_6, %c0_7] : memref<3x8x24xbf16, #tpu.memory_space<vmem>>, vector<1x8x24xbf16>
    %8 = vector.shape_cast %7 : vector<1x8x24xbf16> to vector<8x24xbf16>
    %c0_8 = arith.constant 0 : index
    %c0_9 = arith.constant 0 : index
    %c16 = arith.constant 16 : index
    %9 = vector.load %arg1[%c0_8, %c0_9, %c16] : memref<1x24x288xbf16, #tpu.memory_space<vmem>>, vector<1x24x256xbf16>
    %10 = vector.shape_cast %9 : vector<1x24x256xbf16> to vector<24x256xbf16>
    %cst_10 = arith.constant dense<0.000000e+00> : vector<8x256xf32>
    %11 = tpu.matmul %8, %10, %cst_10 {dimension_numbers = #tpu.dot_dimension_numbers<[1], [0], [0], [1], [0, 0, 1, 1], [], []>} : vector<8x24xbf16>, vector<24x256xbf16>, vector<8x256xf32> -> vector<8x256xf32>
    %12 = arith.addf %6, %11 : vector<8x256xf32>
    %c2 = arith.constant 2 : index
    %c0_11 = arith.constant 0 : index
    %c0_12 = arith.constant 0 : index
    %13 = vector.load %arg2[%c2, %c0_11, %c0_12] : memref<3x8x24xbf16, #tpu.memory_space<vmem>>, vector<1x8x24xbf16>
    %14 = vector.shape_cast %13 : vector<1x8x24xbf16> to vector<8x24xbf16>
    %c0_13 = arith.constant 0 : index
    %c0_14 = arith.constant 0 : index
    %c32 = arith.constant 32 : index
    %15 = vector.load %arg1[%c0_13, %c0_14, %c32] : memref<1x24x288xbf16, #tpu.memory_space<vmem>>, vector<1x24x256xbf16>
    %16 = vector.shape_cast %15 : vector<1x24x256xbf16> to vector<24x256xbf16>
    %cst_15 = arith.constant dense<0.000000e+00> : vector<8x256xf32>
    %17 = tpu.matmul %14, %16, %cst_15 {dimension_numbers = #tpu.dot_dimension_numbers<[1], [0], [0], [1], [0, 0, 1, 1], [], []>} : vector<8x24xbf16>, vector<24x256xbf16>, vector<8x256xf32> -> vector<8x256xf32>
    %18 = arith.addf %12, %17 : vector<8x256xf32>
    %c0_16 = arith.constant 0 : index
    %c0_17 = arith.constant 0 : index
    %19 = vector.load %arg3[%c0_16, %c0_17] : memref<8x1xf32, #tpu.memory_space<vmem>>, vector<8x1xf32>
    %20 = vector.broadcast %19 : vector<8x1xf32> to vector<8x256xf32>
    %21 = arith.addf %18, %20 : vector<8x256xf32>
    %cst_18 = arith.constant 0.000000e+00 : f32
    %22 = vector.broadcast %cst_18 : f32 to vector<8x256xf32>
    %23 = arith.maximumf %21, %22 : vector<8x256xf32>
    %c0_19 = arith.constant 0 : index
    %c0_20 = arith.constant 0 : index
    %c0_21 = arith.constant 0 : index
    %24 = vector.load %arg4[%c0_19, %c0_20, %c0_21] : memref<1x8x256xf32, #tpu.memory_space<vmem>>, vector<1x8x256xf32>
    %25 = vector.shape_cast %24 : vector<1x8x256xf32> to vector<8x256xf32>
    %26 = vector.shape_cast %23 : vector<8x256xf32> to vector<1x8x256xf32>
    tpu.vector_store %arg4[%c0_19, %c0_20, %c0_21], %26 {strides = array<i32>} : memref<1x8x256xf32, #tpu.memory_space<vmem>>, vector<1x8x256xf32>,
    return
  }
  func.func @transform_0(%arg0: i32) -> (i32, i32, i32) {
    %c0_i32 = arith.constant 0 : i32
    %c0_i32_0 = arith.constant 0 : i32
    %c0_i32_1 = arith.constant 0 : i32
    return %arg0, %c0_i32, %c0_i32_0 : i32, i32, i32
  }
  func.func @transform_1(%arg0: i32) -> (i32, i32, i32) {
    %c0_i32 = arith.constant 0 : i32
    %c0_i32_0 = arith.constant 0 : i32
    %c0_i32_1 = arith.constant 0 : i32
    %c0_i32_2 = arith.constant 0 : i32
    return %c0_i32, %c0_i32_0, %c0_i32_1 : i32, i32, i32
  }
  func.func @transform_2(%arg0: i32) -> (i32, i32) {
    %c0_i32 = arith.constant 0 : i32
    %c0_i32_0 = arith.constant 0 : i32
    %c0_i32_1 = arith.constant 0 : i32
    return %c0_i32, %c0_i32_0 : i32, i32
  }
  func.func @transform_3(%arg0: i32) -> (i32, i32, i32) {
    %c0_i32 = arith.constant 0 : i32
    %c0_i32_0 = arith.constant 0 : i32
    %c0_i32_1 = arith.constant 0 : i32
    return %arg0, %c0_i32, %c0_i32_0 : i32, i32, i32
  }
}

</mosaic_0001>

<llo_original>
// kernel: conv2d_relu_pallas.1
$region0: #{conv2d_relu_pallas.1}
  #allocation0 [shape = 'u32[]', space=smem, size = 0x4, offset = 0x4, fixed_abs, tag = 'smem constant byte address 0x4 - core index']
  #allocation1 [shape = 'u32[144,128]{1,0:T(1,128)}', space=vmem, size = 0x12000, scoped, tag = 'internal scratch']
  %s0 = inlined_call_operand.vmem [shape: bf16[2,24,288], index: 0, kind: input, shape index: {}]
  %s1 = inlined_call_operand.vmem [shape: bf16[3,8,24], index: 1, kind: input, shape index: {}]
  %s2 = inlined_call_operand.vmem [shape: f32[8,1], index: 2, kind: input, shape index: {}]
  %s3 = inlined_call_operand.vmem [shape: f32[2,8,256], index: 3, kind: output, shape index: {}]
  %s4 = sld [smem:[#allocation0]]
  $region45: #{conv2d_relu_pallas.1} parent=0
    _
  %s6 = ssub.s32 1, %s4
  %s7 = scalar_select 0, %s6, %s4
  loop: start=0, step=1, limit=4
  $region2: #{conv2d_relu_pallas.1} parent=0 // loop_pre_header
    _
  $region3: #{conv2d_relu_pallas.1} parent=0 // loop_header
    %s9 = sphi 0, %s13
    %p10 = scmp.ge.s32.totalorder %s9, 4
    %s19 = sphi 0, %s21
    %s22 = sphi 0, %s19
    %s23 = sphi 0, %s22
    %s39 = sphi 0, %s23
    %s43 = sphi 0, %s43
    %s45 = sphi 0, %s43
    %s46 = sphi 0, %s45
    %s60 = sphi 0, %s46
    %s64 = sphi 0, %s64
    %s66 = sphi 0, %s64
    %s67 = sphi 0, %s66
    %s81 = sphi 0, %s67
    %s87 = sphi 0, %s89
    %s90 = sphi 0, %s87
    %s91 = sphi 0, %s90
    %s107 = sphi 0, %s91
  $region4: #{conv2d_relu_pallas.1} parent=0 // loop_header_branch
    %12 = sbr.rel (%p10) target = $region8
  $region5: #{conv2d_relu_pallas.1} parent=0 // loop_body
    %s14 = ssub.s32 %s9, 1
    %s15 = ssub.s32 %s9, 2
    %s16 = sadd.s32 %s9, 1
    %s17 = ssub.s32 %s9, %s16
    %p18 = scmp.eq.s32.totalorder %s17, 0
    %s20 = sadd.s32 %s19, 1
    %s21 = scalar_select %p18, %s19, %s20
    %p24 = pneg %p18
    %p25 = scmp.eq.s32.totalorder %s9, 1
    %p26 = por %p24, %p25
    %p27 = scmp.ne.s32.totalorder %s19, %s22
    %p28 = scmp.eq.s32.totalorder %s9, 0
    %p29 = por %p27, %p28
    %p30 = scmp.ne.s32.totalorder %s19, %s22
    %p31 = scmp.eq.s32.totalorder %s14, 1
    %p32 = por %p30, %p31
    %p33 = scmp.ne.s32.totalorder %s22, %s23
    %p34 = scmp.eq.s32.totalorder %s14, 0
    %p35 = por %p33, %p34
    %p36 = scmp.ne.s32.totalorder %s22, %s23
    %p37 = scmp.eq.s32.totalorder %s15, 1
    %p38 = por %p36, %p37
    %p40 = scmp.ne.s32.totalorder %s23, %s39
    %p41 = scmp.eq.s32.totalorder %s15, 0
    %p42 = por %p40, %p41
    %s44 = sadd.s32 %s43, 1
    %p47 = scmp.eq.s32.totalorder %s9, 1
    %p48 = scmp.ne.s32.totalorder %s43, %s45
    %p49 = scmp.eq.s32.totalorder %s9, 0
    %p50 = por %p48, %p49
    %p51 = scmp.ne.s32.totalorder %s43, %s45
    %p52 = scmp.eq.s32.totalorder %s14, 1
    %p53 = por %p51, %p52
    %p54 = scmp.ne.s32.totalorder %s45, %s46
    %p55 = scmp.eq.s32.totalorder %s14, 0
    %p56 = por %p54, %p55
    %p57 = scmp.ne.s32.totalorder %s45, %s46
    %p58 = scmp.eq.s32.totalorder %s15, 1
    %p59 = por %p57, %p58
    %p61 = scmp.ne.s32.totalorder %s46, %s60
    %p62 = scmp.eq.s32.totalorder %s15, 0
    %p63 = por %p61, %p62
    %s65 = sadd.s32 %s64, 1
    %p68 = scmp.eq.s32.totalorder %s9, 1
    %p69 = scmp.ne.s32.totalorder %s64, %s66
    %p70 = scmp.eq.s32.totalorder %s9, 0
    %p71 = por %p69, %p70
    %p72 = scmp.ne.s32.totalorder %s64, %s66
    %p73 = scmp.eq.s32.totalorder %s14, 1
    %p74 = por %p72, %p73
    %p75 = scmp.ne.s32.totalorder %s66, %s67
    %p76 = scmp.eq.s32.totalorder %s14, 0
    %p77 = por %p75, %p76
    %p78 = scmp.ne.s32.totalorder %s66, %s67
    %p79 = scmp.eq.s32.totalorder %s15, 1
    %p80 = por %p78, %p79
    %p82 = scmp.ne.s32.totalorder %s67, %s81
    %p83 = scmp.eq.s32.totalorder %s15, 0
    %p84 = por %p82, %p83
    %s85 = ssub.s32 %s9, %s16
    %p86 = scmp.eq.s32.totalorder %s85, 0
    %s88 = sadd.s32 %s87, 1
    %s89 = scalar_select %p86, %s87, %s88
    %p92 = pneg %p86
    %p93 = scmp.eq.s32.totalorder %s9, 1
    %p94 = por %p92, %p93
    %p95 = scmp.ne.s32.totalorder %s87, %s90
    %p96 = scmp.eq.s32.totalorder %s9, 0
    %p97 = por %p95, %p96
    %p98 = scmp.ne.s32.totalorder %s87, %s90
    %p99 = scmp.eq.s32.totalorder %s14, 1
    %p100 = por %p98, %p99
    %p101 = scmp.ne.s32.totalorder %s90, %s91
    %p102 = scmp.eq.s32.totalorder %s14, 0
    %p103 = por %p101, %p102
    %p104 = scmp.ne.s32.totalorder %s90, %s91
    %p105 = scmp.eq.s32.totalorder %s15, 1
    %p106 = por %p104, %p105
    %p108 = scmp.ne.s32.totalorder %s91, %s107
    %p109 = scmp.eq.s32.totalorder %s15, 0
    %p110 = por %p108, %p109
    %p111 = scmp.le.s32.totalorder 1, %s9
    %p112 = scmp.lt.s32.totalorder %s9, 3
    %p113 = pnand %p111, %p112
    %p114 = pneg %p113
    // Predicated region
    $region9: #{conv2d_relu_pallas.1} parent=5 // pred_check
      _
    $region10: #{conv2d_relu_pallas.1} parent=5 // pred_check_branch
      %116 = sbr.rel (%p113) target = $region12
    $region11: #{conv2d_relu_pallas.1} parent=5 // pred_region
      %s117 = ssub.s32 %s9, 1
      // Predicated region
      $region13: #{conv2d_relu_pallas.1} parent=11 // pred_check
        %p118 = pneg %p56
      $region14: #{conv2d_relu_pallas.1} parent=11 // pred_check_branch
        %120 = sbr.rel (%p118) target = $region16
      $region15: #{conv2d_relu_pallas.1} parent=11 // pred_region
        _
      $region16: #{conv2d_relu_pallas.1} parent=11 // pred_fallthru
        _
      // Predicated region
      $region17: #{conv2d_relu_pallas.1} parent=11 // pred_check
        %p121 = pneg %p77
      $region18: #{conv2d_relu_pallas.1} parent=11 // pred_check_branch
        %123 = sbr.rel (%p121) target = $region20
      $region19: #{conv2d_relu_pallas.1} parent=11 // pred_region
        _
      $region20: #{conv2d_relu_pallas.1} parent=11 // pred_fallthru
        _
    $region12: #{conv2d_relu_pallas.1} parent=5 // pred_fallthru
      _
    %p124 = scmp.lt.s32.totalorder %s9, 2
    // Predicated region
    $region21: #{conv2d_relu_pallas.1} parent=5 // pred_check
      %p125 = pneg %p124
    $region22: #{conv2d_relu_pallas.1} parent=5 // pred_check_branch
      %127 = sbr.rel (%p125) target = $region24
    $region23: #{conv2d_relu_pallas.1} parent=5 // pred_region
      // Predicated region
      $region25: #{conv2d_relu_pallas.1} parent=23 // pred_check
        %p128 = pneg %p29
      $region26: #{conv2d_relu_pallas.1} parent=23 // pred_check_branch
        %130 = sbr.rel (%p128) target = $region28
      $region27: #{conv2d_relu_pallas.1} parent=23 // pred_region
        %p131 = scmp.lt.s32.totalorder %s9, 1
        %s132 = scalar_select %p131, %s9, 1
        %s133 = smul.addr %s132, 9
        %s134 = smul.addr %s133, 4
        %s135 = scalar_lea.vmem %s0, %s134
      $region28: #{conv2d_relu_pallas.1} parent=23 // pred_fallthru
        _
    $region24: #{conv2d_relu_pallas.1} parent=5 // pred_fallthru
      _
    %p136 = scmp.le.s32.totalorder 1, %s9
    %p137 = scmp.lt.s32.totalorder %s9, 3
    %p138 = pnand %p136, %p137
    %p139 = pneg %p138
    // Predicated region
    $region29: #{conv2d_relu_pallas.1} parent=5 // pred_check
      _
    $region30: #{conv2d_relu_pallas.1} parent=5 // pred_check_branch
      %141 = sbr.rel (%p138) target = $region32
    $region31: #{conv2d_relu_pallas.1} parent=5 // pred_region
      %s142 = ssub.s32 %s9, 1
      %p143 = scmp.lt.s32.totalorder %s14, 1
      %s144 = scalar_select %p143, %s14, 1
      %s145 = smul.addr %s144, 9
      %s146 = smul.addr %s145, 4
      %s147 = scalar_lea.vmem %s0, %s146
      %p148 = pneg %p35
      %p149 = pneg %p32
      %p150 = pneg %p56
      %p151 = pneg %p53
      %p152 = pneg %p77
      %p153 = pneg %p74
      %p154 = pneg %p103
      %p155 = pneg %p100
      %p156 = scmp.lt.s32.totalorder %s14, 1
      %s157 = scalar_select %p156, %s14, 1
      %s158 = smul.addr %s157, 2
      %s159 = smul.addr %s158, 8
      %s160 = scalar_lea.vmem %s3, %s159
      %p161 = scmp.lt.s32.totalorder %s14, 1
      %s162 = scalar_select %p161, %s14, 1
      %s163 = smul.addr %s162, 9
      %s164 = smul.addr %s163, 4
      %s165 = scalar_lea.vmem %s0, %s164
      %p166 = scmp.lt.s32.totalorder %s14, 1
      %s167 = scalar_select %p166, %s14, 1
      %s168 = smul.addr %s167, 2
      %s169 = smul.addr %s168, 8
      %s170 = scalar_lea.vmem %s3, %s169
      %v172 = vld [vmem:[%s1] sm:$0xf]
      %v173 = vld [vmem:[%s165] sm:$0xff]
      %v174 = vld [vmem:[%s165 + $0xc] sm:$0xff]
      %v175 = vld [vmem:[%s165 + $0x18] sm:$0xff]
      %s176 = scalar_lea.vmem %s1, 4
      %v177 = vld [vmem:[%s176] sm:$0xf]
      %v178 = vld [vmem:[%s165 + $0x8] sm:$0xf]
      %v179 = vld [vmem:[%s165 + $0x14] sm:$0xf]
      %v180 = vld [vmem:[%s165 + $0x20] sm:$0xf]
      %v187 = vunpack.c.l.b16 %v173
      %v188 = vunpack.c.h.b16 %v173
      %v189 = vunpack.c.l.b16 %v178
      %v190 = vunpack.c.l.b16 %v174
      %v191 = vunpack.c.h.b16 %v174
      %v192 = vunpack.c.l.b16 %v179
      %v193 = vunpack.c.l.b16 %v175
      %v194 = vunpack.c.h.b16 %v175
      %v195 = vunpack.c.l.b16 %v180
      %v196 = vpack.c.b16 %v190, %v187
      %v197 = vpack.c.b16 %v191, %v188
      %v198 = vpack.c.b16 %v192, %v189
      %v199 = vpack.c.b16 %v193, %v193
      %v200 = vpack.c.b16 %v194, %v194
      %v201 = vpack.c.b16 %v195, %v195
      %202 = vrot.lane.b32.xlu0 %v196, 112
      %v203 = vpop.permute.xlu0 %202
      %204 = vrot.lane.b32.xlu0 %v197, 112
      %v205 = vpop.permute.xlu0 %204
      %206 = vrot.lane.b32.xlu0 %v198, 112
      %v207 = vpop.permute.xlu0 %206
      %208 = vrot.lane.b32.xlu0 %v199, 112
      %v209 = vpop.permute.xlu0 %208
      %210 = vrot.lane.b32.xlu0 %v200, 112
      %v211 = vpop.permute.xlu0 %210
      %212 = vrot.lane.b32.xlu0 %v201, 112
      %v213 = vpop.permute.xlu0 %212
      %vm214 = vcmask 916480
      %v215 = vsel %vm214, %v203, %v205
      %v216 = vsel %vm214, %v205, %v207
      %v217 = vsel %vm214, %v209, %v211
      %v218 = vsel %vm214, %v211, %v213
      %vm221 = vcmask 195584
      %v223 = vsel %vm221, %v177, 0
      %vm225 = vcmask 1043456
      %v227 = vsel %vm225, %v217, 0
      %v230 = vsel %vm225, %v218, 0
      %232 = vmatprep.subr.bf16.mxu0 %v216
      %233 = vmatpush1.bf16.msra.mxu0 %v215
      %234 = vmatprep.subr.bf16.mxu0 %v230
      %235 = vmatpush1.bf16.msra.mxu0 %v227
      %236 = vmatprep.subr.bf16.mxu0 0
      %237 = vmatpush1.bf16.msra.mxu0 0
      %238 = vmatprep.subr.bf16.mxu0 0
      %239 = vmatpush1.bf16.msra.mxu0 0
      %240 = vmatprep.subr.bf16.mxu0 0
      %241 = vmatpush1.bf16.msra.mxu0 0
      %242 = vmatprep.subr.bf16.mxu0 0
      %243 = vmatpush1.bf16.msra.mxu0 0
      %244 = vmatprep.subr.bf16.mxu0 0
      %245 = vmatpush1.bf16.msra.mxu0 0
      %246 = vmatprep.subr.bf16.mxu0 0
      %247 = vmatpush1.bf16.msra.mxu0 0
      %248 = vmatprep.subr.bf16.mxu0 0
      %249 = vmatpush1.bf16.msra.mxu0 0
      %250 = vmatprep.subr.bf16.mxu0 0
      %251 = vmatpush1.bf16.msra.mxu0 0
      %252 = vmatprep.subr.bf16.mxu0 0
      %253 = vmatpush1.bf16.msra.mxu0 0
      %254 = vmatprep.subr.bf16.mxu0 0
      %255 = vmatpush1.bf16.msra.mxu0 0
      %256 = vmatprep.subr.bf16.mxu0 0
      %257 = vmatpush1.bf16.msra.mxu0 0
      %258 = vmatprep.subr.bf16.mxu0 0
      %259 = vmatpush1.bf16.msra.mxu0 0
      %260 = vmatprep.subr.bf16.mxu0 0
      %261 = vmatpush1.bf16.msra.mxu0 0
      %262 = vmatprep.subr.bf16.mxu0 0
      %263 = vmatpush1.bf16.msra.mxu0 0
      %264 = vmatprep.mubr.bf16.mxu0 0
      %265 = vmatmul.mubr.bf16.gmra.mrb[0].mxu0 %v223
      %v266 = vpop.f32.mrb[0].mxu0
      %v267 = vadd.f32 0.0, %v266
      %v268 = vpop.f32.mrb[0].mxu0
      %v269 = vadd.f32 0.0, %v268
      %v270 = vpop.f32.mrb[0].mxu0
      %v271 = vpop.f32.mrb[0].mxu0
      %272 = vdwg.mxu0
      %v276 = vsel %vm221, %v172, 0
      %v279 = vsel %vm225, %v199, 0
      %v282 = vsel %vm225, %v200, 0
      %284 = vmatprep.subr.bf16.mxu0 %v197
      %285 = vmatpush1.bf16.msra.mxu0 %v196
      %286 = vmatprep.subr.bf16.mxu0 %v282
      %287 = vmatpush1.bf16.msra.mxu0 %v279
      %288 = vmatprep.subr.bf16.mxu0 0
      %289 = vmatpush1.bf16.msra.mxu0 0
      %290 = vmatprep.subr.bf16.mxu0 0
      %291 = vmatpush1.bf16.msra.mxu0 0
      %292 = vmatprep.subr.bf16.mxu0 0
      %293 = vmatpush1.bf16.msra.mxu0 0
      %294 = vmatprep.subr.bf16.mxu0 0
      %295 = vmatpush1.bf16.msra.mxu0 0
      %296 = vmatprep.subr.bf16.mxu0 0
      %297 = vmatpush1.bf16.msra.mxu0 0
      %298 = vmatprep.subr.bf16.mxu0 0
      %299 = vmatpush1.bf16.msra.mxu0 0
      %300 = vmatprep.subr.bf16.mxu0 0
      %301 = vmatpush1.bf16.msra.mxu0 0
      %302 = vmatprep.subr.bf16.mxu0 0
      %303 = vmatpush1.bf16.msra.mxu0 0
      %304 = vmatprep.subr.bf16.mxu0 0
      %305 = vmatpush1.bf16.msra.mxu0 0
      %306 = vmatprep.subr.bf16.mxu0 0
      %307 = vmatpush1.bf16.msra.mxu0 0
      %308 = vmatprep.subr.bf16.mxu0 0
      %309 = vmatpush1.bf16.msra.mxu0 0
      %310 = vmatprep.subr.bf16.mxu0 0
      %311 = vmatpush1.bf16.msra.mxu0 0
      %312 = vmatprep.subr.bf16.mxu0 0
      %313 = vmatpush1.bf16.msra.mxu0 0
      %314 = vmatprep.subr.bf16.mxu0 0
      %315 = vmatpush1.bf16.msra.mxu0 0
      %316 = vmatprep.mubr.bf16.mxu0 0
      %317 = vmatmul.mubr.bf16.gmra.mrb[0].mxu0 %v276
      %v318 = vpop.f32.mrb[0].mxu0
      %v319 = vadd.f32 %v267, %v318
      %v320 = vpop.f32.mrb[0].mxu0
      %v321 = vadd.f32 %v269, %v320
      %v322 = vpop.f32.mrb[0].mxu0
      %v323 = vpop.f32.mrb[0].mxu0
      %324 = vdwg.mxu0
      %s325 = scalar_lea.vmem %s1, 8
      %v326 = vld [vmem:[%s325] sm:$0xf]
      %327 = vrot.lane.b32.xlu0 %v196, 96
      %v328 = vpop.permute.xlu0 %327
      %329 = vrot.lane.b32.xlu0 %v197, 96
      %v330 = vpop.permute.xlu0 %329
      %331 = vrot.lane.b32.xlu0 %v198, 96
      %v332 = vpop.permute.xlu0 %331
      %333 = vrot.lane.b32.xlu0 %v199, 96
      %v334 = vpop.permute.xlu0 %333
      %335 = vrot.lane.b32.xlu0 %v200, 96
      %v336 = vpop.permute.xlu0 %335
      %337 = vrot.lane.b32.xlu0 %v201, 96
      %v338 = vpop.permute.xlu0 %337
      %vm339 = vcmask 785408
      %v340 = vsel %vm339, %v328, %v330
      %v341 = vsel %vm339, %v330, %v332
      %v342 = vsel %vm339, %v334, %v336
      %v343 = vsel %vm339, %v336, %v338
      %v347 = vsel %vm221, %v326, 0
      %v350 = vsel %vm225, %v342, 0
      %v353 = vsel %vm225, %v343, 0
      %355 = vmatprep.subr.bf16.mxu0 %v341
      %356 = vmatpush1.bf16.msra.mxu0 %v340
      %357 = vmatprep.subr.bf16.mxu0 %v353
      %358 = vmatpush1.bf16.msra.mxu0 %v350
      %359 = vmatprep.subr.bf16.mxu0 0
      %360 = vmatpush1.bf16.msra.mxu0 0
      %361 = vmatprep.subr.bf16.mxu0 0
      %362 = vmatpush1.bf16.msra.mxu0 0
      %363 = vmatprep.subr.bf16.mxu0 0
      %364 = vmatpush1.bf16.msra.mxu0 0
      %365 = vmatprep.subr.bf16.mxu0 0
      %366 = vmatpush1.bf16.msra.mxu0 0
      %367 = vmatprep.subr.bf16.mxu0 0
      %368 = vmatpush1.bf16.msra.mxu0 0
      %369 = vmatprep.subr.bf16.mxu0 0
      %370 = vmatpush1.bf16.msra.mxu0 0
      %371 = vmatprep.subr.bf16.mxu0 0
      %372 = vmatpush1.bf16.msra.mxu0 0
      %373 = vmatprep.subr.bf16.mxu0 0
      %374 = vmatpush1.bf16.msra.mxu0 0
      %375 = vmatprep.subr.bf16.mxu0 0
      %376 = vmatpush1.bf16.msra.mxu0 0
      %377 = vmatprep.subr.bf16.mxu0 0
      %378 = vmatpush1.bf16.msra.mxu0 0
      %379 = vmatprep.subr.bf16.mxu0 0
      %380 = vmatpush1.bf16.msra.mxu0 0
      %381 = vmatprep.subr.bf16.mxu0 0
      %382 = vmatpush1.bf16.msra.mxu0 0
      %383 = vmatprep.subr.bf16.mxu0 0
      %384 = vmatpush1.bf16.msra.mxu0 0
      %385 = vmatprep.subr.bf16.mxu0 0
      %386 = vmatpush1.bf16.msra.mxu0 0
      %387 = vmatprep.mubr.bf16.mxu0 0
      %388 = vmatmul.mubr.bf16.gmra.mrb[0].mxu0 %v347
      %v389 = vpop.f32.mrb[0].mxu0
      %v390 = vadd.f32 0.0, %v389
      %v391 = vpop.f32.mrb[0].mxu0
      %v392 = vadd.f32 0.0, %v391
      %v393 = vpop.f32.mrb[0].mxu0
      %v394 = vpop.f32.mrb[0].mxu0
      %395 = vdwg.mxu0
      %v396 = vadd.f32 %v319, %v390
      %v397 = vadd.f32 %v321, %v392
      %v398 = vld [vmem:[%s2] sm:$0xff]
      %400 = vset.pattern.permute.xlu0 0
      %401 = vperm.xlu0 %400, %v398
      %v402 = vpop.permute.xlu0 %401
      %v404 = vadd.f32 %v396, %v402
      %v405 = vadd.f32 %v397, %v402
      %v406 = vmax.f32 %v404, 0.0
      %v407 = vmax.f32 %v405, 0.0
      %408 = vst [vmem:[%s170] sm:$0xff] %v406
      %409 = vst [vmem:[%s170 + $0x8] sm:$0xff] %v407
      %p410 = scmp.lt.s32.totalorder %s14, 1
      %s411 = scalar_select %p410, %s14, 1
      %s412 = smul.addr %s411, 2
      %s413 = smul.addr %s412, 8
      %s414 = scalar_lea.vmem %s3, %s413
      // Predicated region
      $region33: #{conv2d_relu_pallas.1} parent=31 // pred_check
        %p415 = pneg %p100
      $region34: #{conv2d_relu_pallas.1} parent=31 // pred_check_branch
        %417 = sbr.rel (%p415) target = $region36
      $region35: #{conv2d_relu_pallas.1} parent=31 // pred_region
        _
      $region36: #{conv2d_relu_pallas.1} parent=31 // pred_fallthru
        _
    $region32: #{conv2d_relu_pallas.1} parent=5 // pred_fallthru
      _
    %p418 = scmp.le.s32.totalorder 2, %s9
    // Predicated region
    $region37: #{conv2d_relu_pallas.1} parent=5 // pred_check
      %p419 = pneg %p418
    $region38: #{conv2d_relu_pallas.1} parent=5 // pred_check_branch
      %421 = sbr.rel (%p419) target = $region40
    $region39: #{conv2d_relu_pallas.1} parent=5 // pred_region
      %s422 = ssub.s32 %s9, 2
      // Predicated region
      $region41: #{conv2d_relu_pallas.1} parent=39 // pred_check
        %p423 = pneg %p106
      $region42: #{conv2d_relu_pallas.1} parent=39 // pred_check_branch
        %425 = sbr.rel (%p423) target = $region44
      $region43: #{conv2d_relu_pallas.1} parent=39 // pred_region
        %p426 = scmp.lt.s32.totalorder %s15, 1
        %s427 = scalar_select %p426, %s15, 1
        %s428 = smul.addr %s427, 2
        %s429 = smul.addr %s428, 8
        %s430 = scalar_lea.vmem %s3, %s429
      $region44: #{conv2d_relu_pallas.1} parent=39 // pred_fallthru
        _
    $region40: #{conv2d_relu_pallas.1} parent=5 // pred_fallthru
      _
  $region6: #{conv2d_relu_pallas.1} parent=0 // loop_footer
    %s13 = sadd.s32 1, %s9
  $region7: #{conv2d_relu_pallas.1} parent=0 // loop_footer_branch
    %8 = sbr.rel target = $region3
  $region8: #{conv2d_relu_pallas.1} parent=0 // loop_exit
    _

</llo_original>
